<compile_context>
chip_gen: v7x
topology: tpu7x:2x2x1
jax: 0.10.0
libtpu: 0.0.40
codegen_flags: <defaults>
</compile_context>

<pallas_src>
import math

import jax
import jax.numpy as jnp
from jax.experimental import pallas as pl
from jax.experimental.pallas import tpu as pltpu

LN_EPS = 1e-5


def _ceil_to(v, m):
    return ((v + m - 1) // m) * m


def _vmem_capacity_bytes():
    try:
        return int(pltpu.get_tpu_info().vmem_capacity_bytes)
    except Exception:
        return 64 * 1024 * 1024  # conservative: v7x per-TC VMEM


def _vmem_estimate(tm, tn, K, x_bytes, o_bytes):
    """Estimate VMEM usage including the kernel's internal temporaries."""
    x_blk = 2 * tm * K * x_bytes          # double-buffered activation tile
    w_blk = 2 * K * tn * 1                # double-buffered int8 weight tile
    o_blk = 2 * tm * tn * o_bytes         # double-buffered output tile
    xn_cache = tm * K * 2                 # bf16 LayerNorm cache (scratch, single)
    temps = tm * K * 4 + K * tn * 2 + tm * tn * 4   # f32 x, bf16 w cast, f32 acc
    return x_blk + w_blk + o_blk + xn_cache + temps


def _bitlinear_kernel(x_ref, w_ref, beta_ref, o_ref, xn_ref):
    """Computes one (tm, tn) output tile.

    x_ref:    (tm, K)  activations (input dtype), same block for all j
    w_ref:    (K, tn)  pre-quantized sign weights, int8 {-1,0,+1}, pre-transposed
    beta_ref: (1,)     f32 global scale in SMEM
    o_ref:    (tm, tn) output tile (input dtype)
    xn_ref:   (tm, K)  bf16 VMEM scratch caching LayerNorm(x) across the j axis
    """
    # LayerNorm over the full (un-tiled) feature dim, computed once per row
    # tile (first j step) and cached; reused for every subsequent N tile.
    @pl.when(pl.program_id(1) == 0)
    def _():
        x = x_ref[...].astype(jnp.float32)
        mu = jnp.mean(x, axis=-1, keepdims=True)
        xc = x - mu
        var = jnp.mean(xc * xc, axis=-1, keepdims=True)
        xn_ref[...] = (xc * jax.lax.rsqrt(var + LN_EPS)).astype(jnp.bfloat16)

    # int8 {-1,0,+1} -> bf16 (exact), then bf16 x bf16 MXU matmul w/ f32 acc.
    w = w_ref[...].astype(jnp.bfloat16)
    acc = jnp.dot(xn_ref[...], w, preferred_element_type=jnp.float32)

    # f32 epilogue: scale by global beta, cast to output dtype.
    o_ref[...] = (acc * beta_ref[0]).astype(o_ref.dtype)


def bitlinear_forward(x, weight, *, tm=None, tn=None):
    """x: (..., in_features); weight: (out_features, in_features) like nn.Linear."""
    orig_shape = x.shape
    K = orig_shape[-1]
    N = weight.shape[0]
    M = 1
    for d in orig_shape[:-1]:
        M *= d
    x2d = x.reshape(M, K)

    # ---- one-time weight preprocessing (GLOBAL stats, must not be per-tile) ----
    # NOTE: if weights are reused across calls (inference), hoist/cache w_q & beta.
    w32 = weight.astype(jnp.float32)
    w_c = w32 - jnp.mean(w32)
    beta = jnp.mean(jnp.abs(w_c)).reshape(1)            # (1,) f32 scalar -> SMEM
    # {-1,0,+1} stored as int8 (halves the re-streamed weight HBM bytes and the
    # weight double-buffer), pre-transposed to (K, N) so the kernel needs no
    # in-kernel relayout. Widened to bf16 by one VPU cast inside the kernel.
    w_q = jnp.sign(w_c).astype(jnp.int8).T              # (K, N)

    x_bytes = x2d.dtype.itemsize
    o_bytes = x_bytes

    # ---- tn: multiple of 128 minimizing N padding (tiebreak: larger tile) ----
    n128 = _ceil_to(N, 128)
    if tn is None:
        best_pad, tn_eff = None, 128
        for cand in range(128, min(n128, 512) + 1, 128):
            pad = _ceil_to(N, cand)
            if best_pad is None or pad < best_pad or (pad == best_pad and cand > tn_eff):
                best_pad, tn_eff = pad, cand
        n_pad = best_pad
    else:
        tn_eff = max(128, (min(tn, n128) // 128) * 128)
        n_pad = _ceil_to(N, tn_eff)

    # ---- tm: largest sublane multiple fitting the per-generation VMEM budget ----
    vmem_cap = _vmem_capacity_bytes()
    budget = min(int(0.8 * vmem_cap), 96 * 1024 * 1024)
    if tm is None:
        tm_eff = 8
        for cand in (1024, 768, 512, 384, 256, 192, 128, 64, 32, 16, 8):
            if _vmem_estimate(cand, tn_eff, K, x_bytes, o_bytes) <= budget:
                tm_eff = cand
                break
    else:
        tm_eff = max(8, (tm // 8) * 8)
    tm_eff = min(tm_eff, _ceil_to(M, 8))
    m_pad = _ceil_to(M, tm_eff)

    if m_pad != M:
        x2d = jnp.pad(x2d, ((0, m_pad - M), (0, 0)))   # zero rows -> LN gives 0, sliced off
    if n_pad != N:
        w_q = jnp.pad(w_q, ((0, 0), (0, n_pad - N)))

    grid = (m_pad // tm_eff, n_pad // tn_eff)

    vmem_needed = _vmem_estimate(tm_eff, tn_eff, K, x_bytes, o_bytes)
    vmem_limit = int(min(max(int(1.3 * vmem_needed), 32 * 1024 * 1024), vmem_cap))

    cost = pl.CostEstimate(
        flops=2 * m_pad * n_pad * K,
        transcendentals=0,
        bytes_accessed=(m_pad * K * x_bytes                 # activations read once
                        + grid[0] * K * n_pad * 1           # int8 weight re-streamed per row tile
                        + m_pad * n_pad * o_bytes),          # output written once
    )

    out = pl.pallas_call(
        _bitlinear_kernel,
        out_shape=jax.ShapeDtypeStruct((m_pad, n_pad), x.dtype),
        grid_spec=pltpu.PrefetchScalarGridSpec(
            num_scalar_prefetch=0,
            grid=grid,
            in_specs=[
                pl.BlockSpec((tm_eff, K), lambda i, j: (i, 0)),
                pl.BlockSpec((K, tn_eff), lambda i, j: (0, j)),
                pl.BlockSpec(memory_space=pltpu.MemorySpace.SMEM),
            ],
            out_specs=pl.BlockSpec((tm_eff, tn_eff), lambda i, j: (i, j)),
            scratch_shapes=[pltpu.VMEM((tm_eff, K), jnp.bfloat16)],  # LN cache
        ),
        compiler_params=pltpu.CompilerParams(
            # j carries the LN cache across N tiles -> must be "arbitrary".
            dimension_semantics=("parallel", "arbitrary"),
            vmem_limit_bytes=vmem_limit,
        ),
        cost_estimate=cost,
    )(x2d, w_q, beta)

    out = out[:M, :N]
    return out.reshape(*orig_shape[:-1], N)


def init_params(key, in_features, out_features, bias=True):
    """Deterministic kaiming_uniform_(a=sqrt(5)) style init, like the module."""
    kw, kb = jax.random.split(key)
    a = math.sqrt(5.0)
    gain = math.sqrt(2.0 / (1.0 + a * a))
    fan_in = in_features
    bound_w = gain * math.sqrt(3.0 / fan_in)
    weight = jax.random.uniform(
        kw, (out_features, in_features), jnp.float32, -bound_w, bound_w)
    if bias:
        bound_b = 1.0 / math.sqrt(fan_in)
        b = jax.random.uniform(kb, (out_features,), jnp.float32, -bound_b, bound_b)
    else:
        b = None  # NOTE: bias is never used in BitLinearBaseline.forward
    return weight, b


def _reference(x, weight):
    w_c = weight - jnp.mean(weight)
    beta = jnp.mean(jnp.abs(w_c))
    mu = jnp.mean(x, axis=-1, keepdims=True)
    var = jnp.mean((x - mu) ** 2, axis=-1, keepdims=True)
    x_n = (x - mu) / jnp.sqrt(var + LN_EPS)
    return (x_n @ jnp.sign(w_c).T) * beta


if __name__ == "__main__":
    key = jax.random.PRNGKey(0)
    k_x, k_p = jax.random.split(key)

    # Small shapes; explicit tm=64 / tn=128 force a (2, 3) grid so the LN-cache
    # path (j > 0 reuse) and multi-row-tile path are both exercised.
    batch, seq, in_features, out_features = 2, 64, 256, 384
    x = jax.random.normal(k_x, (batch, seq, in_features), jnp.float32)
    weight, bias = init_params(k_p, in_features, out_features, bias=True)

    out = jax.block_until_ready(bitlinear_forward(x, weight, tm=64, tn=128))
    ref = _reference(x, weight)

    assert out.shape == (batch, seq, out_features)
    # bf16 cast of the normalized activations relaxes tolerance vs the f32 ref;
    # sign weights (int8) and beta are exact.
    assert jnp.allclose(out, ref, atol=2e-2, rtol=2e-2), "mismatch vs reference"

    # Also check the auto-tiled path (single call, default tile selection).
    out_auto = jax.block_until_ready(bitlinear_forward(x, weight))
    assert jnp.allclose(out_auto, ref, atol=2e-2, rtol=2e-2), "auto-tile mismatch"

    print("KERNEL_OK")
</pallas_src>

<mosaic_0001>
module attributes {stable_mosaic.version = 11 : i64} {
  func.func @_bitlinear_kernel(%arg0: i32, %arg1: i32, %arg2: memref<64x256xf32, #tpu.memory_space<vmem>>, %arg3: memref<256x128xi8, #tpu.memory_space<vmem>>, %arg4: memref<1xf32, #tpu.memory_space<smem>>, %arg5: memref<64x128xf32, #tpu.memory_space<vmem>>, %arg6: memref<64x256xbf16, #tpu.memory_space<vmem>>) attributes {dimension_semantics = [#tpu.dimension_semantics<parallel>, #tpu.dimension_semantics<arbitrary>], iteration_bounds = array<i64: 2, 3>, scalar_prefetch = 0 : i64, scratch_operands = 1 : i64, tpu.core_type = #tpu.core_type<tc>, window_params = [{transform_indices = @transform_0, window_bounds = array<i64: 64, 256>}, {transform_indices = @transform_1, window_bounds = array<i64: 256, 128>}, {transform_indices = @transform_2, window_bounds = array<i64: 1>}, {transform_indices = @transform_3, window_bounds = array<i64: 64, 128>}]} {
    %c0_i32 = arith.constant 0 : i32
    %0 = arith.cmpi eq, %arg1, %c0_i32 : i32
    %1 = arith.extui %0 : i1 to i32
    %c0_i32_0 = arith.constant 0 : i32
    %2 = arith.cmpi ne, %1, %c0_i32_0 : i32
    scf.if %2 {
      %c0_7 = arith.constant 0 : index
      %c0_8 = arith.constant 0 : index
      %11 = vector.load %arg2[%c0_7, %c0_8] : memref<64x256xf32, #tpu.memory_space<vmem>>, vector<64x256xf32>
      %cst_9 = arith.constant dense<0.000000e+00> : vector<64xf32>
      %12 = vector.multi_reduction <add>, %11, %cst_9 [1] : vector<64x256xf32> to vector<64xf32>
      %13 = vector.shape_cast %12 : vector<64xf32> to vector<64x1xf32>
      %cst_10 = arith.constant 2.560000e+02 : f32
      %14 = vector.broadcast %cst_10 : f32 to vector<64x1xf32>
      %15 = arith.divf %13, %14 : vector<64x1xf32>
      %16 = vector.broadcast %15 : vector<64x1xf32> to vector<64x256xf32>
      %17 = arith.subf %11, %16 : vector<64x256xf32>
      %18 = arith.mulf %17, %17 : vector<64x256xf32>
      %cst_11 = arith.constant dense<0.000000e+00> : vector<64xf32>
      %19 = vector.multi_reduction <add>, %18, %cst_11 [1] : vector<64x256xf32> to vector<64xf32>
      %20 = vector.shape_cast %19 : vector<64xf32> to vector<64x1xf32>
      %cst_12 = arith.constant 2.560000e+02 : f32
      %21 = vector.broadcast %cst_12 : f32 to vector<64x1xf32>
      %22 = arith.divf %20, %21 : vector<64x1xf32>
      %cst_13 = arith.constant 9.99999974E-6 : f32
      %23 = vector.broadcast %cst_13 : f32 to vector<64x1xf32>
      %24 = arith.addf %22, %23 : vector<64x1xf32>
      %25 = math.rsqrt %24 : vector<64x1xf32>
      %26 = vector.broadcast %25 : vector<64x1xf32> to vector<64x256xf32>
      %27 = arith.mulf %17, %26 : vector<64x256xf32>
      %28 = arith.truncf %27 : vector<64x256xf32> to vector<64x256xbf16>
      %c0_14 = arith.constant 0 : index
      %c0_15 = arith.constant 0 : index
      %29 = vector.load %arg6[%c0_14, %c0_15] : memref<64x256xbf16, #tpu.memory_space<vmem>>, vector<64x256xbf16>
      tpu.vector_store %arg6[%c0_14, %c0_15], %28 {strides = array<i32>} : memref<64x256xbf16, #tpu.memory_space<vmem>>, vector<64x256xbf16>,
    } else {
    }
    %c0 = arith.constant 0 : index
    %c0_1 = arith.constant 0 : index
    %3 = vector.load %arg3[%c0, %c0_1] : memref<256x128xi8, #tpu.memory_space<vmem>>, vector<256x128xi8>
    %4 = arith.sitofp %3 : vector<256x128xi8> to vector<256x128xbf16>
    %c0_2 = arith.constant 0 : index
    %c0_3 = arith.constant 0 : index
    %5 = vector.load %arg6[%c0_2, %c0_3] : memref<64x256xbf16, #tpu.memory_space<vmem>>, vector<64x256xbf16>
    %cst = arith.constant dense<0.000000e+00> : vector<64x128xf32>
    %6 = tpu.matmul %5, %4, %cst {dimension_numbers = #tpu.dot_dimension_numbers<[1], [0], [0], [1], [0, 0, 1, 1], [], []>} : vector<64x256xbf16>, vector<256x128xbf16>, vector<64x128xf32> -> vector<64x128xf32>
    %c0_4 = arith.constant 0 : index
    %7 = memref.load %arg4[%c0_4] : memref<1xf32, #tpu.memory_space<smem>>
    %8 = vector.broadcast %7 : f32 to vector<64x128xf32>
    %9 = arith.mulf %6, %8 : vector<64x128xf32>
    %c0_5 = arith.constant 0 : index
    %c0_6 = arith.constant 0 : index
    %10 = vector.load %arg5[%c0_5, %c0_6] : memref<64x128xf32, #tpu.memory_space<vmem>>, vector<64x128xf32>
    tpu.vector_store %arg5[%c0_5, %c0_6], %9 {strides = array<i32>} : memref<64x128xf32, #tpu.memory_space<vmem>>, vector<64x128xf32>,
    return
  }
  func.func @transform_0(%arg0: i32, %arg1: i32) -> (i32, i32) {
    %c0_i32 = arith.constant 0 : i32
    %c0_i32_0 = arith.constant 0 : i32
    return %arg0, %c0_i32 : i32, i32
  }
  func.func @transform_1(%arg0: i32, %arg1: i32) -> (i32, i32) {
    %c0_i32 = arith.constant 0 : i32
    %c0_i32_0 = arith.constant 0 : i32
    return %c0_i32, %arg1 : i32, i32
  }
  func.func @transform_2(%arg0: i32, %arg1: i32) -> i32 {
    %c0_i32 = arith.constant 0 : i32
    %c0_i32_0 = arith.constant 0 : i32
    return %c0_i32 : i32
  }
  func.func @transform_3(%arg0: i32, %arg1: i32) -> (i32, i32) {
    %c0_i32 = arith.constant 0 : i32
    return %arg0, %arg1 : i32, i32
  }
}

</mosaic_0001>

<llo_original>
// kernel: tpu_custom_call.1
$region0: #{tpu_custom_call.1}
  #allocation0 [shape = 'u32[]', space=smem, size = 0x4, offset = 0x4, fixed_abs, tag = 'smem constant byte address 0x4 - core index']
  #allocation1 [shape = 'u32[144,128]{1,0:T(1,128)}', space=vmem, size = 0x12000, scoped, tag = 'internal scratch']
  #allocation2 [shape = 'bf16[64,256]{1,0:T(16,128)(2,1)}', space=vmem, size = 0x8000, scoped, tag = 'scratch operand']
  #allocation3 [shape = 'f32[1]{0:T(128)S(6)}', space=smem, size = 0x200, scoped, tag = 'scoped memory for tpu_custom_call.1']
  %s0 = inlined_call_operand.hbm [shape: f32[128,256], index: 0, kind: input, shape index: {}]
  %s1 = inlined_call_operand.hbm [shape: s8[256,384], index: 1, kind: input, shape index: {}]
  %s2 = inlined_call_operand.<no memory space> [shape: f32[1], index: 2, kind: input, shape index: {}]
  %s3 = inlined_call_operand.hbm [shape: f32[128,384], index: 3, kind: output, shape index: {}]
  %s4 = sld [smem:[#allocation0]]
  $region57: #{tpu_custom_call.1} parent=0
    _
  %s6 = ssub.s32 1, %s4
  %s7 = scalar_select 0, %s6, %s4
  %8 = sst [smem:[#allocation3]] %s2
  $region1: #{tpu_custom_call.1} parent=0
    #allocation4 [shape = 'u8[131072]{0}', space=vmem, size = 0x20000, scoped, tag = 'input window, operand 0']
    #allocation5 [shape = 's32[2]{0}', space=sflag, size = 0x8, scoped, tag = 'scoped memory for tpu_custom_call.1']
    #allocation6 [shape = 's32[2]{0}', space=sflag, size = 0x8, scoped, tag = 'scoped memory for tpu_custom_call.1']
    #allocation7 [shape = 'u8[65536]{0}', space=vmem, size = 0x10000, scoped, tag = 'input window, operand 1']
    #allocation8 [shape = 's32[2]{0}', space=sflag, size = 0x8, scoped, tag = 'scoped memory for tpu_custom_call.1']
    #allocation9 [shape = 'u8[65536]{0}', space=vmem, size = 0x10000, scoped, tag = 'output window, operand 0']
    %9 = vsyncpa [#allocation5], 0
    %s10 = scalar_lea.sflag [#allocation5], 1
    %11 = vsyncpa %s10, 0
    %12 = vsyncpa [#allocation8], 0
    %s13 = scalar_lea.sflag [#allocation8], 1
    %14 = vsyncpa %s13, 0
    %15 = vsyncpa [#allocation6], 0
    %s16 = scalar_lea.sflag [#allocation6], 1
    %17 = vsyncpa %s16, 0
    loop: start=0, step=1, limit=8
    $region2: #{tpu_custom_call.1} parent=1 // loop_pre_header
      _
    $region3: #{tpu_custom_call.1} parent=1 // loop_header
      %s19 = sphi 0, %s23
      %p20 = scmp.ge.s32.totalorder %s19, 8
      %s26 = sphi 0, %s38
      %s27 = sphi 0, %s34
      %s28 = sphi 0, %s26
      %s29 = sphi 0, %s27
      %s30 = sphi 0, %s28
      %s31 = sphi 0, %s29
      %s41 = sphi 0, %s43
      %s44 = sphi 0, %s41
      %s45 = sphi 0, %s44
      %s61 = sphi 0, %s45
      %s67 = sphi 0, %s69
      %s70 = sphi 0, %s67
      %s71 = sphi 0, %s70
      %s87 = sphi 0, %s71
      %s91 = sphi 0, %s91
      %s93 = sphi 0, %s91
      %s94 = sphi 0, %s93
      %s108 = sphi 0, %s94
      %s116 = sphi 0, %s118
      %s119 = sphi 0, %s116
      %s120 = sphi 0, %s119
      %s136 = sphi 0, %s120
    $region4: #{tpu_custom_call.1} parent=1 // loop_header_branch
      %22 = sbr.rel (%p20) target = $region8
    $region5: #{tpu_custom_call.1} parent=1 // loop_body
      %s24 = ssub.s32 %s19, 1
      %s25 = ssub.s32 %s19, 2
      %s32 = sadd.s32 1, %s27
      %p33 = scmp.ge.s32.totalorder %s32, 3
      %s34 = scalar_select %p33, 0, %s32
      %s35 = sadd.s32 1, %s26
      %s36 = scalar_select %p33, %s35, %s26
      %p37 = scmp.ge.s32.totalorder %s36, 2
      %s38 = scalar_select %p37, 0, %s36
      %s39 = ssub.s32 %s26, %s38
      %p40 = scmp.eq.s32.totalorder %s39, 0
      %s42 = sadd.s32 %s41, 1
      %s43 = scalar_select %p40, %s41, %s42
      %p46 = pneg %p40
      %p47 = scmp.eq.s32.totalorder %s19, 5
      %p48 = por %p46, %p47
      %p49 = scmp.ne.s32.totalorder %s41, %s44
      %p50 = scmp.eq.s32.totalorder %s19, 0
      %p51 = por %p49, %p50
      %p52 = scmp.ne.s32.totalorder %s41, %s44
      %p53 = scmp.eq.s32.totalorder %s24, 5
      %p54 = por %p52, %p53
      %p55 = scmp.ne.s32.totalorder %s44, %s45
      %p56 = scmp.eq.s32.totalorder %s24, 0
      %p57 = por %p55, %p56
      %p58 = scmp.ne.s32.totalorder %s44, %s45
      %p59 = scmp.eq.s32.totalorder %s25, 5
      %p60 = por %p58, %p59
      %p62 = scmp.ne.s32.totalorder %s45, %s61
      %p63 = scmp.eq.s32.totalorder %s25, 0
      %p64 = por %p62, %p63
      %s65 = ssub.s32 %s27, %s34
      %p66 = scmp.eq.s32.totalorder %s65, 0
      %s68 = sadd.s32 %s67, 1
      %s69 = scalar_select %p66, %s67, %s68
      %p72 = pneg %p66
      %p73 = scmp.eq.s32.totalorder %s19, 5
      %p74 = por %p72, %p73
      %p75 = scmp.ne.s32.totalorder %s67, %s70
      %p76 = scmp.eq.s32.totalorder %s19, 0
      %p77 = por %p75, %p76
      %p78 = scmp.ne.s32.totalorder %s67, %s70
      %p79 = scmp.eq.s32.totalorder %s24, 5
      %p80 = por %p78, %p79
      %p81 = scmp.ne.s32.totalorder %s70, %s71
      %p82 = scmp.eq.s32.totalorder %s24, 0
      %p83 = por %p81, %p82
      %p84 = scmp.ne.s32.totalorder %s70, %s71
      %p85 = scmp.eq.s32.totalorder %s25, 5
      %p86 = por %p84, %p85
      %p88 = scmp.ne.s32.totalorder %s71, %s87
      %p89 = scmp.eq.s32.totalorder %s25, 0
      %p90 = por %p88, %p89
      %s92 = sadd.s32 %s91, 1
      %p95 = scmp.eq.s32.totalorder %s19, 5
      %p96 = scmp.ne.s32.totalorder %s91, %s93
      %p97 = scmp.eq.s32.totalorder %s19, 0
      %p98 = por %p96, %p97
      %p99 = scmp.ne.s32.totalorder %s91, %s93
      %p100 = scmp.eq.s32.totalorder %s24, 5
      %p101 = por %p99, %p100
      %p102 = scmp.ne.s32.totalorder %s93, %s94
      %p103 = scmp.eq.s32.totalorder %s24, 0
      %p104 = por %p102, %p103
      %p105 = scmp.ne.s32.totalorder %s93, %s94
      %p106 = scmp.eq.s32.totalorder %s25, 5
      %p107 = por %p105, %p106
      %p109 = scmp.ne.s32.totalorder %s94, %s108
      %p110 = scmp.eq.s32.totalorder %s25, 0
      %p111 = por %p109, %p110
      %s112 = ssub.s32 %s26, %s38
      %s113 = ssub.s32 %s27, %s34
      %s114 = sor.u32 %s112, %s113
      %p115 = scmp.eq.s32.totalorder %s114, 0
      %s117 = sadd.s32 %s116, 1
      %s118 = scalar_select %p115, %s116, %s117
      %p121 = pneg %p115
      %p122 = scmp.eq.s32.totalorder %s19, 5
      %p123 = por %p121, %p122
      %p124 = scmp.ne.s32.totalorder %s116, %s119
      %p125 = scmp.eq.s32.totalorder %s19, 0
      %p126 = por %p124, %p125
      %p127 = scmp.ne.s32.totalorder %s116, %s119
      %p128 = scmp.eq.s32.totalorder %s24, 5
      %p129 = por %p127, %p128
      %p130 = scmp.ne.s32.totalorder %s119, %s120
      %p131 = scmp.eq.s32.totalorder %s24, 0
      %p132 = por %p130, %p131
      %p133 = scmp.ne.s32.totalorder %s119, %s120
      %p134 = scmp.eq.s32.totalorder %s25, 5
      %p135 = por %p133, %p134
      %p137 = scmp.ne.s32.totalorder %s120, %s136
      %p138 = scmp.eq.s32.totalorder %s25, 0
      %p139 = por %p137, %p138
      %p140 = scmp.le.s32.totalorder 1, %s19
      %p141 = scmp.lt.s32.totalorder %s19, 7
      %p142 = pnand %p140, %p141
      %p143 = pneg %p142
      // Predicated region
      $region9: #{tpu_custom_call.1} parent=5 // pred_check
        _
      $region10: #{tpu_custom_call.1} parent=5 // pred_check_branch
        %145 = sbr.rel (%p142) target = $region12
      $region11: #{tpu_custom_call.1} parent=5 // pred_region
        %s146 = ssub.s32 %s19, 1
        // Predicated region
        $region13: #{tpu_custom_call.1} parent=11 // pred_check
          %p147 = pneg %p104
        $region14: #{tpu_custom_call.1} parent=11 // pred_check_branch
          %149 = sbr.rel (%p147) target = $region16
        $region15: #{tpu_custom_call.1} parent=11 // pred_region
          _
        $region16: #{tpu_custom_call.1} parent=11 // pred_fallthru
          _
      $region12: #{tpu_custom_call.1} parent=5 // pred_fallthru
        _
      %p150 = scmp.lt.s32.totalorder %s19, 6
      // Predicated region
      $region17: #{tpu_custom_call.1} parent=5 // pred_check
        %p151 = pneg %p150
      $region18: #{tpu_custom_call.1} parent=5 // pred_check_branch
        %153 = sbr.rel (%p151) target = $region20
      $region19: #{tpu_custom_call.1} parent=5 // pred_region
        // Predicated region
        $region21: #{tpu_custom_call.1} parent=19 // pred_check
          %p154 = pneg %p51
        $region22: #{tpu_custom_call.1} parent=19 // pred_check_branch
          %156 = sbr.rel (%p154) target = $region24
        $region23: #{tpu_custom_call.1} parent=19 // pred_region
          %s157 = sand.u32 %s41, 1
          %s158 = scalar_lea.sflag [#allocation5], %s157
          %s159 = sand.u32 %s41, 1
          %s160 = smul.addr %s159, 128
          %s161 = scalar_lea.vmem [#allocation4], %s160
          %s162 = smul.u32 8, %s26
          %s164 = ssub.s32 2048, 2048
          %165 = vsyncadd %s158, %s164
          %s166 = smul.addr %s162, 2
          %s167 = smul.addr %s166, 128
          %s168 = scalar_lea.hbm %s0, %s167
          %s169 = sshll.u32 %s161, 4
          %s170 = int_to_ptr.vmem [resolvable:$true] %s169
          %175 = dma.hbm_to_vmem [thread:$0]  %s168, 2048, %s170, %s158, 256, 256, 16
        $region24: #{tpu_custom_call.1} parent=19 // pred_fallthru
          _
        // Predicated region
        $region25: #{tpu_custom_call.1} parent=19 // pred_check
          %p176 = pneg %p77
        $region26: #{tpu_custom_call.1} parent=19 // pred_check_branch
          %178 = sbr.rel (%p176) target = $region28
        $region27: #{tpu_custom_call.1} parent=19 // pred_region
          %s179 = sand.u32 %s67, 1
          %s180 = scalar_lea.sflag [#allocation8], %s179
          %s181 = sand.u32 %s67, 1
          %s182 = smul.addr %s181, 64
          %s183 = scalar_lea.vmem [#allocation7], %s182
          %s185 = ssub.s32 1024, 1024
          %186 = vsyncadd %s180, %s185
          %s187 = smul.addr %s27, 128
          %s188 = scalar_lea.hbm %s1, %s187
          %s189 = sshll.u32 %s183, 4
          %s190 = int_to_ptr.vmem [resolvable:$true] %s189
          %195 = dma.hbm_to_vmem [thread:$0]  %s188, 1024, %s190, %s180, 384, 128, 8
        $region28: #{tpu_custom_call.1} parent=19 // pred_fallthru
          _
      $region20: #{tpu_custom_call.1} parent=5 // pred_fallthru
        _
      %p196 = scmp.le.s32.totalorder 1, %s19
      %p197 = scmp.lt.s32.totalorder %s19, 7
      %p198 = pnand %p196, %p197
      %p199 = pneg %p198
      // Predicated region
      $region29: #{tpu_custom_call.1} parent=5 // pred_check
        _
      $region30: #{tpu_custom_call.1} parent=5 // pred_check_branch
        %201 = sbr.rel (%p198) target = $region32
      $region31: #{tpu_custom_call.1} parent=5 // pred_region
        %s202 = ssub.s32 %s19, 1
        %s203 = sand.u32 %s44, 1
        %s204 = scalar_lea.sflag [#allocation5], %s203
        %s205 = sand.u32 %s44, 1
        %s206 = smul.addr %s205, 128
        %s207 = scalar_lea.vmem [#allocation4], %s206
        // Predicated region
        $region33: #{tpu_custom_call.1} parent=31 // pred_check
          %p208 = pneg %p57
        $region34: #{tpu_custom_call.1} parent=31 // pred_check_branch
          %210 = sbr.rel (%p208) target = $region36
        $region35: #{tpu_custom_call.1} parent=31 // pred_region
          %211 = dma.done %s204, 2048
        $region36: #{tpu_custom_call.1} parent=31 // pred_fallthru
          _
        %s212 = sand.u32 %s70, 1
        %s213 = scalar_lea.sflag [#allocation8], %s212
        %s214 = sand.u32 %s70, 1
        %s215 = smul.addr %s214, 64
        %s216 = scalar_lea.vmem [#allocation7], %s215
        // Predicated region
        $region37: #{tpu_custom_call.1} parent=31 // pred_check
          %p217 = pneg %p83
        $region38: #{tpu_custom_call.1} parent=31 // pred_check_branch
          %219 = sbr.rel (%p217) target = $region40
        $region39: #{tpu_custom_call.1} parent=31 // pred_region
          %220 = dma.done %s213, 1024
        $region40: #{tpu_custom_call.1} parent=31 // pred_fallthru
          _
        %s221 = sand.u32 %s44, 1
        %s222 = scalar_lea.sflag [#allocation5], %s221
        %s223 = sand.u32 %s44, 1
        %s224 = smul.addr %s223, 128
        %s225 = scalar_lea.vmem [#allocation4], %s224
        %p226 = pneg %p57
        %p227 = pneg %p54
        %s228 = sand.u32 %s70, 1
        %s229 = scalar_lea.sflag [#allocation8], %s228
        %s230 = sand.u32 %s70, 1
        %s231 = smul.addr %s230, 64
        %s232 = scalar_lea.vmem [#allocation7], %s231
        %p233 = pneg %p83
        %p234 = pneg %p80
        %p235 = pneg %p104
        %p236 = pneg %p101
        %p237 = pneg %p132
        %p238 = pneg %p129
        %s239 = sand.u32 %s119, 1
        %s240 = scalar_lea.sflag [#allocation6], %s239
        %s241 = sand.u32 %s119, 1
        %s242 = smul.addr %s241, 64
        %s243 = scalar_lea.vmem [#allocation9], %s242
        %s244 = smul.u32 8, %s28
        %s245 = smul.u32 8, %s28
        %p247 = scmp.eq.s32.totalorder %s29, 0
        // Predicated region
        $region41: #{tpu_custom_call.1} parent=31 // pred_check
          %p248 = pneg %p247
        $region42: #{tpu_custom_call.1} parent=31 // pred_check_branch
          %250 = sbr.rel (%p248) target = $region44
        $region43: #{tpu_custom_call.1} parent=31 // pred_region
          %v251 = vld [vmem:[%s207] sm:$0xff]
          %v252 = vld [vmem:[%s207 + $0x8] sm:$0xff]
          %v253 = vld [vmem:[%s207 + $0x10] sm:$0xff]
          %v254 = vld [vmem:[%s207 + $0x18] sm:$0xff]
          %v255 = vld [vmem:[%s207 + $0x20] sm:$0xff]
          %v256 = vld [vmem:[%s207 + $0x28] sm:$0xff]
          %v257 = vld [vmem:[%s207 + $0x30] sm:$0xff]
          %v258 = vld [vmem:[%s207 + $0x38] sm:$0xff]
          %v259 = vld [vmem:[%s207 + $0x40] sm:$0xff]
          %v260 = vld [vmem:[%s207 + $0x48] sm:$0xff]
          %v261 = vld [vmem:[%s207 + $0x50] sm:$0xff]
          %v262 = vld [vmem:[%s207 + $0x58] sm:$0xff]
          %v263 = vld [vmem:[%s207 + $0x60] sm:$0xff]
          %v264 = vld [vmem:[%s207 + $0x68] sm:$0xff]
          %v265 = vld [vmem:[%s207 + $0x70] sm:$0xff]
          %v266 = vld [vmem:[%s207 + $0x78] sm:$0xff]
          %v267 = vadd.f32 %v251, %v252
          %268 = vadd.xlane.f32.xlu0 %v267
          %v269 = vpop.xlane.xlu0 %268
          %v270 = vadd.f32 %v253, %v254
          %271 = vadd.xlane.f32.xlu0 %v270
          %v272 = vpop.xlane.xlu0 %271
          %v273 = vadd.f32 %v255, %v256
          %274 = vadd.xlane.f32.xlu0 %v273
          %v275 = vpop.xlane.xlu0 %274
          %v276 = vadd.f32 %v257, %v258
          %277 = vadd.xlane.f32.xlu0 %v276
          %v278 = vpop.xlane.xlu0 %277
          %v279 = vadd.f32 %v259, %v260
          %280 = vadd.xlane.f32.xlu0 %v279
          %v281 = vpop.xlane.xlu0 %280
          %v282 = vadd.f32 %v261, %v262
          %283 = vadd.xlane.f32.xlu0 %v282
          %v284 = vpop.xlane.xlu0 %283
          %v285 = vadd.f32 %v263, %v264
          %286 = vadd.xlane.f32.xlu0 %v285
          %v287 = vpop.xlane.xlu0 %286
          %v288 = vadd.f32 %v265, %v266
          %289 = vadd.xlane.f32.xlu0 %v288
          %v290 = vpop.xlane.xlu0 %289
          %v291 = vrcp.pop 256.0
          %v292 = vmul.f32 %v269, %v291
          %v293 = vmul.f32 %v272, %v291
          %v294 = vmul.f32 %v275, %v291
          %v295 = vmul.f32 %v278, %v291
          %v296 = vmul.f32 %v281, %v291
          %v297 = vmul.f32 %v284, %v291
          %v298 = vmul.f32 %v287, %v291
          %v299 = vmul.f32 %v290, %v291
          %v300 = vsub.f32 %v251, %v292
          %v301 = vsub.f32 %v252, %v292
          %v302 = vsub.f32 %v253, %v293
          %v303 = vsub.f32 %v254, %v293
          %v304 = vsub.f32 %v255, %v294
          %v305 = vsub.f32 %v256, %v294
          %v306 = vsub.f32 %v257, %v295
          %v307 = vsub.f32 %v258, %v295
          %v308 = vsub.f32 %v259, %v296
          %v309 = vsub.f32 %v260, %v296
          %v310 = vsub.f32 %v261, %v297
          %v311 = vsub.f32 %v262, %v297
          %v312 = vsub.f32 %v263, %v298
          %v313 = vsub.f32 %v264, %v298
          %v314 = vsub.f32 %v265, %v299
          %v315 = vsub.f32 %v266, %v299
          %v316 = vmul.f32 %v300, %v300
          %v317 = vmul.f32 %v301, %v301
          %v318 = vmul.f32 %v302, %v302
          %v319 = vmul.f32 %v303, %v303
          %v320 = vmul.f32 %v304, %v304
          %v321 = vmul.f32 %v305, %v305
          %v322 = vmul.f32 %v306, %v306
          %v323 = vmul.f32 %v307, %v307
          %v324 = vmul.f32 %v308, %v308
          %v325 = vmul.f32 %v309, %v309
          %v326 = vmul.f32 %v310, %v310
          %v327 = vmul.f32 %v311, %v311
          %v328 = vmul.f32 %v312, %v312
          %v329 = vmul.f32 %v313, %v313
          %v330 = vmul.f32 %v314, %v314
          %v331 = vmul.f32 %v315, %v315
          %v332 = vadd.f32 %v316, %v317
          %333 = vadd.xlane.f32.xlu0 %v332
          %v334 = vpop.xlane.xlu0 %333
          %v335 = vadd.f32 %v318, %v319
          %336 = vadd.xlane.f32.xlu0 %v335
          %v337 = vpop.xlane.xlu0 %336
          %v338 = vadd.f32 %v320, %v321
          %339 = vadd.xlane.f32.xlu0 %v338
          %v340 = vpop.xlane.xlu0 %339
          %v341 = vadd.f32 %v322, %v323
          %342 = vadd.xlane.f32.xlu0 %v341
          %v343 = vpop.xlane.xlu0 %342
          %v344 = vadd.f32 %v324, %v325
          %345 = vadd.xlane.f32.xlu0 %v344
          %v346 = vpop.xlane.xlu0 %345
          %v347 = vadd.f32 %v326, %v327
          %348 = vadd.xlane.f32.xlu0 %v347
          %v349 = vpop.xlane.xlu0 %348
          %v350 = vadd.f32 %v328, %v329
          %351 = vadd.xlane.f32.xlu0 %v350
          %v352 = vpop.xlane.xlu0 %351
          %v353 = vadd.f32 %v330, %v331
          %354 = vadd.xlane.f32.xlu0 %v353
          %v355 = vpop.xlane.xlu0 %354
          %v356 = vmul.f32 %v334, %v291
          %v357 = vmul.f32 %v337, %v291
          %v358 = vmul.f32 %v340, %v291
          %v359 = vmul.f32 %v343, %v291
          %v360 = vmul.f32 %v346, %v291
          %v361 = vmul.f32 %v349, %v291
          %v362 = vmul.f32 %v352, %v291
          %v363 = vmul.f32 %v355, %v291
          %v364 = vadd.f32 %v356, 1e-05
          %v365 = vadd.f32 %v357, 1e-05
          %v366 = vadd.f32 %v358, 1e-05
          %v367 = vadd.f32 %v359, 1e-05
          %v368 = vadd.f32 %v360, 1e-05
          %v369 = vadd.f32 %v361, 1e-05
          %v370 = vadd.f32 %v362, 1e-05
          %v371 = vadd.f32 %v363, 1e-05
          %v372 = vrsqrt.pop %v364
          %v373 = vrsqrt.pop %v365
          %v374 = vrsqrt.pop %v366
          %v375 = vrsqrt.pop %v367
          %v376 = vrsqrt.pop %v368
          %v377 = vrsqrt.pop %v369
          %v378 = vrsqrt.pop %v370
          %v379 = vrsqrt.pop %v371
          %v380 = vmul.f32 %v300, %v372
          %v381 = vmul.f32 %v301, %v372
          %v382 = vmul.f32 %v302, %v373
          %v383 = vmul.f32 %v303, %v373
          %v384 = vmul.f32 %v304, %v374
          %v385 = vmul.f32 %v305, %v374
          %v386 = vmul.f32 %v306, %v375
          %v387 = vmul.f32 %v307, %v375
          %v388 = vmul.f32 %v308, %v376
          %v389 = vmul.f32 %v309, %v376
          %v390 = vmul.f32 %v310, %v377
          %v391 = vmul.f32 %v311, %v377
          %v392 = vmul.f32 %v312, %v378
          %v393 = vmul.f32 %v313, %v378
          %v394 = vmul.f32 %v314, %v379
          %v395 = vmul.f32 %v315, %v379
          %v396 = vpack.c.bf16 %v382, %v380
          %v397 = vpack.c.bf16 %v383, %v381
          %v398 = vpack.c.bf16 %v386, %v384
          %v399 = vpack.c.bf16 %v387, %v385
          %v400 = vpack.c.bf16 %v390, %v388
          %v401 = vpack.c.bf16 %v391, %v389
          %v402 = vpack.c.bf16 %v394, %v392
          %v403 = vpack.c.bf16 %v395, %v393
          %404 = vst [vmem:[#allocation2] sm:$0xff] %v396
          %405 = vst [vmem:[#allocation2 + $0x8] sm:$0xff] %v397
          %406 = vst [vmem:[#allocation2 + $0x10] sm:$0xff] %v398
          %407 = vst [vmem:[#allocation2 + $0x18] sm:$0xff] %v399
          %408 = vst [vmem:[#allocation2 + $0x20] sm:$0xff] %v400
          %409 = vst [vmem:[#allocation2 + $0x28] sm:$0xff] %v401
          %410 = vst [vmem:[#allocation2 + $0x30] sm:$0xff] %v402
          %411 = vst [vmem:[#allocation2 + $0x38] sm:$0xff] %v403
        $region44: #{tpu_custom_call.1} parent=31 // pred_fallthru
          _
        %v412 = vld [vmem:[%s216] sm:$0xff]
        %v413 = vld [vmem:[%s216 + $0x8] sm:$0xff]
        %v414 = vld [vmem:[%s216 + $0x10] sm:$0xff]
        %v415 = vld [vmem:[%s216 + $0x18] sm:$0xff]
        %v416 = vld [vmem:[%s216 + $0x20] sm:$0xff]
        %v417 = vld [vmem:[%s216 + $0x28] sm:$0xff]
        %v418 = vld [vmem:[%s216 + $0x30] sm:$0xff]
        %v419 = vld [vmem:[%s216 + $0x38] sm:$0xff]
        %v420 = vunpack.c.l.s8.bf16 %v412
        %v421 = vunpack.c.h.s8.bf16 %v412
        %v422 = vunpack.c.l.s8.bf16 %v413
        %v423 = vunpack.c.h.s8.bf16 %v413
        %v424 = vunpack.c.l.s8.bf16 %v414
        %v425 = vunpack.c.h.s8.bf16 %v414
        %v426 = vunpack.c.l.s8.bf16 %v415
        %v427 = vunpack.c.h.s8.bf16 %v415
        %v428 = vunpack.c.l.s8.bf16 %v416
        %v429 = vunpack.c.h.s8.bf16 %v416
        %v430 = vunpack.c.l.s8.bf16 %v417
        %v431 = vunpack.c.h.s8.bf16 %v417
        %v432 = vunpack.c.l.s8.bf16 %v418
        %v433 = vunpack.c.h.s8.bf16 %v418
        %v434 = vunpack.c.l.s8.bf16 %v419
        %v435 = vunpack.c.h.s8.bf16 %v419
        %v436 = vld [vmem:[#allocation2] sm:$0xff]
        %v437 = vld [vmem:[#allocation2 + $0x8] sm:$0xff]
        %v438 = vld [vmem:[#allocation2 + $0x10] sm:$0xff]
        %v439 = vld [vmem:[#allocation2 + $0x18] sm:$0xff]
        %v440 = vld [vmem:[#allocation2 + $0x20] sm:$0xff]
        %v441 = vld [vmem:[#allocation2 + $0x28] sm:$0xff]
        %v442 = vld [vmem:[#allocation2 + $0x30] sm:$0xff]
        %v443 = vld [vmem:[#allocation2 + $0x38] sm:$0xff]
        %444 = vmatprep.subr.bf16.mxu0 0
        %445 = vmatpush1.bf16.msra.mxu0 %v420
        %446 = vmatprep.subr.bf16.mxu0 0
        %447 = vmatpush1.bf16.msra.mxu0 %v421
        %448 = vmatprep.subr.bf16.mxu0 0
        %449 = vmatpush1.bf16.msra.mxu0 %v422
        %450 = vmatprep.subr.bf16.mxu0 0
        %451 = vmatpush1.bf16.msra.mxu0 %v423
        %452 = vmatprep.subr.bf16.mxu0 0
        %453 = vmatpush1.bf16.msra.mxu0 %v424
        %454 = vmatprep.subr.bf16.mxu0 0
        %455 = vmatpush1.bf16.msra.mxu0 %v425
        %456 = vmatprep.subr.bf16.mxu0 0
        %457 = vmatpush1.bf16.msra.mxu0 %v426
        %458 = vmatprep.subr.bf16.mxu0 0
        %459 = vmatpush1.bf16.msra.mxu0 %v427
        %460 = vmatprep.subr.bf16.mxu0 0
        %461 = vmatpush1.bf16.msra.mxu0 %v428
        %462 = vmatprep.subr.bf16.mxu0 0
        %463 = vmatpush1.bf16.msra.mxu0 %v429
        %464 = vmatprep.subr.bf16.mxu0 0
        %465 = vmatpush1.bf16.msra.mxu0 %v430
        %466 = vmatprep.subr.bf16.mxu0 0
        %467 = vmatpush1.bf16.msra.mxu0 %v431
        %468 = vmatprep.subr.bf16.mxu0 0
        %469 = vmatpush1.bf16.msra.mxu0 %v432
        %470 = vmatprep.subr.bf16.mxu0 0
        %471 = vmatpush1.bf16.msra.mxu0 %v433
        %472 = vmatprep.subr.bf16.mxu0 0
        %473 = vmatpush1.bf16.msra.mxu0 %v434
        %474 = vmatprep.subr.bf16.mxu0 0
        %475 = vmatpush1.bf16.msra.mxu0 %v435
        %476 = vmatprep.mubr.bf16.mxu0 %v437
        %477 = vmatmul.mubr.bf16.gmra.mrb[0].mxu0 %v436
        %v478 = vpop.f32.mrb[0].mxu0
        %v479 = vadd.f32 0.0, %v478
        %v480 = vpop.f32.mrb[0].mxu0
        %v481 = vpop.f32.mrb[0].mxu0
        %v482 = vadd.f32 0.0, %v481
        %v483 = vpop.f32.mrb[0].mxu0
        %484 = vmatprep.mubr.bf16.mxu0 %v439
        %485 = vmatmul.mubr.bf16.gmra.mrb[0].mxu0 %v438
        %v486 = vpop.f32.mrb[0].mxu0
        %v487 = vadd.f32 0.0, %v486
        %v488 = vpop.f32.mrb[0].mxu0
        %v489 = vpop.f32.mrb[0].mxu0
        %v490 = vadd.f32 0.0, %v489
        %v491 = vpop.f32.mrb[0].mxu0
        %492 = vmatprep.mubr.bf16.mxu0 %v441
        %493 = vmatmul.mubr.bf16.gmra.mrb[0].mxu0 %v440
        %v494 = vpop.f32.mrb[0].mxu0
        %v495 = vadd.f32 0.0, %v494
        %v496 = vpop.f32.mrb[0].mxu0
        %v497 = vpop.f32.mrb[0].mxu0
        %v498 = vadd.f32 0.0, %v497
        %v499 = vpop.f32.mrb[0].mxu0
        %500 = vmatprep.mubr.bf16.mxu0 %v443
        %501 = vmatmul.mubr.bf16.gmra.mrb[0].mxu0 %v442
        %v502 = vpop.f32.mrb[0].mxu0
        %v503 = vadd.f32 0.0, %v502
        %v504 = vpop.f32.mrb[0].mxu0
        %v505 = vpop.f32.mrb[0].mxu0
        %v506 = vadd.f32 0.0, %v505
        %v507 = vpop.f32.mrb[0].mxu0
        %508 = vdwg.mxu0
        %s509 = sld [smem:[#allocation3]]
        %v510 = vstv %s509
        %v511 = vmul.f32 %v479, %v510
        %v512 = vmul.f32 %v482, %v510
        %v513 = vmul.f32 %v487, %v510
        %v514 = vmul.f32 %v490, %v510
        %v515 = vmul.f32 %v495, %v510
        %v516 = vmul.f32 %v498, %v510
        %v517 = vmul.f32 %v503, %v510
        %v518 = vmul.f32 %v506, %v510
        %519 = vst [vmem:[%s243] sm:$0xff] %v511
        %520 = vst [vmem:[%s243 + $0x8] sm:$0xff] %v512
        %521 = vst [vmem:[%s243 + $0x10] sm:$0xff] %v513
        %522 = vst [vmem:[%s243 + $0x18] sm:$0xff] %v514
        %523 = vst [vmem:[%s243 + $0x20] sm:$0xff] %v515
        %524 = vst [vmem:[%s243 + $0x28] sm:$0xff] %v516
        %525 = vst [vmem:[%s243 + $0x30] sm:$0xff] %v517
        %526 = vst [vmem:[%s243 + $0x38] sm:$0xff] %v518
        %s527 = sand.u32 %s119, 1
        %s528 = scalar_lea.sflag [#allocation6], %s527
        %s529 = sand.u32 %s119, 1
        %s530 = smul.addr %s529, 64
        %s531 = scalar_lea.vmem [#allocation9], %s530
        // Predicated region
        $region45: #{tpu_custom_call.1} parent=31 // pred_check
          %p532 = pneg %p129
        $region46: #{tpu_custom_call.1} parent=31 // pred_check_branch
          %534 = sbr.rel (%p532) target = $region48
        $region47: #{tpu_custom_call.1} parent=31 // pred_region
          %s535 = smul.u32 8, %s28
          %s537 = ssub.s32 1024, 1024
          %538 = vsyncadd %s528, %s537
          %s539 = smul.addr %s535, 3
          %s540 = sadd.s32 %s29, %s539
          %s541 = smul.addr %s540, 128
          %s542 = scalar_lea.hbm %s3, %s541
          %s543 = sshll.u32 %s531, 4
          %s544 = int_to_ptr.vmem [resolvable:$true] %s543
          %549 = dma.vmem_to_hbm [thread:$0]  %s544, 1024, %s542, %s528, 128, 384, 8
        $region48: #{tpu_custom_call.1} parent=31 // pred_fallthru
          _
      $region32: #{tpu_custom_call.1} parent=5 // pred_fallthru
        _
      %p550 = scmp.le.s32.totalorder 2, %s19
      // Predicated region
      $region49: #{tpu_custom_call.1} parent=5 // pred_check
        %p551 = pneg %p550
      $region50: #{tpu_custom_call.1} parent=5 // pred_check_branch
        %553 = sbr.rel (%p551) target = $region52
      $region51: #{tpu_custom_call.1} parent=5 // pred_region
        %s554 = ssub.s32 %s19, 2
        // Predicated region
        $region53: #{tpu_custom_call.1} parent=51 // pred_check
          %p555 = pneg %p135
        $region54: #{tpu_custom_call.1} parent=51 // pred_check_branch
          %557 = sbr.rel (%p555) target = $region56
        $region55: #{tpu_custom_call.1} parent=51 // pred_region
          %s558 = sand.u32 %s120, 1
          %s559 = scalar_lea.sflag [#allocation6], %s558
          %s560 = sand.u32 %s120, 1
          %s561 = smul.addr %s560, 64
          %s562 = scalar_lea.vmem [#allocation9], %s561
          %563 = dma.done %s559, 1024
        $region56: #{tpu_custom_call.1} parent=51 // pred_fallthru
          _
      $region52: #{tpu_custom_call.1} parent=5 // pred_fallthru
        _
    $region6: #{tpu_custom_call.1} parent=1 // loop_footer
      %s23 = sadd.s32 1, %s19
    $region7: #{tpu_custom_call.1} parent=1 // loop_footer_branch
      %18 = sbr.rel target = $region3
    $region8: #{tpu_custom_call.1} parent=1 // loop_exit
      _
    %564 = vsyncpa [#allocation5], 1
    %s565 = scalar_lea.sflag [#allocation5], 1
    %566 = vsyncpa %s565, 1
    %567 = vsyncpa [#allocation8], 1
    %s568 = scalar_lea.sflag [#allocation8], 1
    %569 = vsyncpa %s568, 1
    %570 = vsyncpa [#allocation6], 1
    %s571 = scalar_lea.sflag [#allocation6], 1
    %572 = vsyncpa %s571, 1

</llo_original>
